<compile_context>
chip_gen: v5e
topology: v5e:2x2
jax: 0.10.0
libtpu: 0.0.40
codegen_flags: <defaults>
</compile_context>

<pallas_src>
import jax
import jax.numpy as jnp
from jax.experimental import pallas as pl
from jax.experimental.pallas import tpu as pltpu


_LANE = 128            # lane width
_SUBLANE = 8           # f32 sublane tile height
_BF16_ROW_TILE = 16    # bf16 sublane tile height -> weight-slab row alignment


def _round_up(x, m):
    return (x + m - 1) // m * m


def _make_kernel(layer_dims, row_offs):
    """Fused forward: 8 Linear layers, ReLU after all but the last.

    layer_dims: list of (din, dout) per layer (static Python ints).
    row_offs:   static row offset of each layer's weight inside the slab."""
    n_layers = len(layer_dims)

    def kernel(x_ref, w_ref, b_ref, out_ref):
        # Matmul operands in bf16 on the MXU, f32 accumulation; bias add and
        # ReLU in f32 on the VPU; inter-layer hand-off downcast to bf16 once.
        h = x_ref[...].astype(jnp.bfloat16)
        for i, (din, dout) in enumerate(layer_dims):
            off = row_offs[i]
            w = w_ref[off:off + din, 0:dout]              # static slice (din, dout) bf16
            y = jnp.dot(h, w, preferred_element_type=jnp.float32)
            y = y + b_ref[i:i + 1, 0:dout]                # (1, dout) f32 broadcast
            if i != n_layers - 1:
                h = jnp.maximum(y, 0.0).astype(jnp.bfloat16)
            else:
                out_ref[...] = y.astype(out_ref.dtype)    # final Linear: no activation

    return kernel


def _pack_params(params):
    """Pack the 8 (W, b) pairs into two VMEM-resident slabs:
         w_slab: (sum_rows, max_out) bf16, each W at a 16-row-aligned offset
         b_slab: (n_layers, max_out) f32
    so the kernel issues 2 parameter DMAs instead of 16."""
    layer_dims = [(int(w.shape[0]), int(w.shape[1])) for w, _ in params]
    max_out = _round_up(max(d for _, d in layer_dims), _LANE)
    row_offs, rows = [], 0
    for din, _ in layer_dims:
        row_offs.append(rows)
        rows += _round_up(din, _BF16_ROW_TILE)
    w_slab = jnp.zeros((rows, max_out), jnp.bfloat16)
    b_slab = jnp.zeros((len(params), max_out), jnp.float32)
    for i, (w, b) in enumerate(params):
        din, dout = layer_dims[i]
        w_slab = w_slab.at[row_offs[i]:row_offs[i] + din, :dout].set(
            w.astype(jnp.bfloat16))
        b_slab = b_slab.at[i, :dout].set(jnp.reshape(b, (-1,)).astype(jnp.float32))
    return w_slab, b_slab, layer_dims, row_offs


def _pick_batch_tile(batch):
    """Batch-tile heuristic:
       * batch <= 256: ONE exact grid step (block dim == full array dim is legal;
         avoids per-step overhead and pointless splitting on single-TC v5e/v6e).
       * larger batches: big tiles (amortize ~0.35us/step, long DMA bursts) with
         an EVEN number of grid steps so both v7x TensorCores stay busy."""
    if batch <= 256:
        return batch
    cap = 2048 if batch >= 4096 else 1024
    steps = pl.cdiv(batch, cap)
    if steps % 2:
        steps += 1
    return _round_up(pl.cdiv(batch, steps), _SUBLANE)


def autoencoder_forward(x, params, *, batch_tile=None, out_dtype=jnp.bfloat16):
    """x: (B, input_dim), f32 or bf16 (bf16 halves the input DMA).
    params: list of 8 (W, b) with W already transposed to (in_features, out_features).
    Returns (B, input_dim) in out_dtype (default bf16 halves the output DMA)."""
    B, D_in = x.shape
    assert params[0][0].shape[0] == D_in and params[-1][0].shape[1] == D_in

    if batch_tile is None:
        batch_tile = _pick_batch_tile(B)
    grid = (pl.cdiv(B, batch_tile),)   # remainder -> masked partial last block

    w_slab, b_slab, layer_dims, row_offs = _pack_params(params)
    kernel = _make_kernel(layer_dims, row_offs)

    # x / out are pipelined over the batch grid; last dim == full array dim
    # (no 128-padding needed).  The two parameter slabs are VMEM-resident.
    x_spec = pl.BlockSpec((batch_tile, D_in), lambda i: (i, 0))
    out_spec = pl.BlockSpec((batch_tile, D_in), lambda i: (i, 0))
    w_spec = pl.BlockSpec(memory_space=pltpu.MemorySpace.VMEM)
    b_spec = pl.BlockSpec(memory_space=pltpu.MemorySpace.VMEM)

    flops = 2 * B * sum(din * dout for din, dout in layer_dims)
    bytes_accessed = int(B * D_in * jnp.dtype(x.dtype).itemsize
                         + B * D_in * jnp.dtype(out_dtype).itemsize
                         + w_slab.size * 2 + b_slab.size * 4)

    out = pl.pallas_call(
        kernel,
        out_shape=jax.ShapeDtypeStruct((B, D_in), out_dtype),
        grid_spec=pltpu.PrefetchScalarGridSpec(
            num_scalar_prefetch=0,
            grid=grid,
            in_specs=[x_spec, w_spec, b_spec],
            out_specs=out_spec,
        ),
        compiler_params=pltpu.CompilerParams(
            dimension_semantics=("parallel",),
            vmem_limit_bytes=32 * 1024 * 1024,
        ),
        cost_estimate=pl.CostEstimate(
            flops=flops, transcendentals=0, bytes_accessed=bytes_accessed),
    )(x, w_slab, b_slab)

    return out


def init_params(key, input_dim, encoding_dim=32, dtype=jnp.float32):
    """Deterministic synthetic parameters matching the PyTorch module's shapes.
    Weights are returned already transposed to (in_features, out_features)."""
    dims = [input_dim, 256, 128, 64, encoding_dim, 64, 128, 256, input_dim]
    params = []
    for i in range(len(dims) - 1):
        din, dout = dims[i], dims[i + 1]
        key, kw, kb = jax.random.split(key, 3)
        scale = 1.0 / jnp.sqrt(jnp.asarray(din, dtype))
        w = jax.random.uniform(kw, (din, dout), dtype, -scale, scale)
        b = jax.random.uniform(kb, (1, dout), dtype, -scale, scale)
        params.append((w, b))
    return params


def reference_forward(x, params):
    """Plain-JAX reference mirroring the kernel numerics: bf16 matmul operands,
    f32 accumulation, f32 bias add / ReLU, bf16 inter-layer hand-off."""
    h = x.astype(jnp.bfloat16)
    n = len(params)
    for i, (w, b) in enumerate(params):
        y = jnp.dot(h, w.astype(jnp.bfloat16),
                    preferred_element_type=jnp.float32) + b.astype(jnp.float32)
        if i != n - 1:
            h = jnp.maximum(y, 0.0).astype(jnp.bfloat16)
        else:
            return y


if __name__ == "__main__":
    key = jax.random.PRNGKey(0)
    B, INPUT_DIM, ENC_DIM = 32, 64, 32

    key, kx = jax.random.split(key)
    x = jax.random.normal(kx, (B, INPUT_DIM), jnp.float32)
    params = init_params(key, INPUT_DIM, ENC_DIM)

    out = autoencoder_forward(x, params)          # tile=32 -> single grid step
    out = jax.block_until_ready(out)

    ref = reference_forward(x, params)
    assert out.shape == (B, INPUT_DIM)
    assert out.dtype == jnp.bfloat16
    assert jnp.allclose(out.astype(jnp.float32), ref, atol=2e-2, rtol=2e-2)

    print("KERNEL_OK")
</pallas_src>

<mosaic_0001>
module attributes {stable_mosaic.version = 11 : i64} {
  func.func @kernel(%arg0: i32, %arg1: memref<32x64xf32, #tpu.memory_space<vmem>>, %arg2: memref<992x256xbf16, #tpu.memory_space<vmem>>, %arg3: memref<8x256xf32, #tpu.memory_space<vmem>>, %arg4: memref<32x64xbf16, #tpu.memory_space<vmem>>) attributes {dimension_semantics = [#tpu.dimension_semantics<parallel>], iteration_bounds = array<i64: 1>, scalar_prefetch = 0 : i64, scratch_operands = 0 : i64, tpu.core_type = #tpu.core_type<tc>, window_params = [{transform_indices = @transform_0, window_bounds = array<i64: 32, 64>}, {pipeline_mode = #tpu.pipeline_mode<synchronous>, transform_indices = @transform_1, window_bounds = array<i64: 992, 256>}, {pipeline_mode = #tpu.pipeline_mode<synchronous>, transform_indices = @transform_2, window_bounds = array<i64: 8, 256>}, {transform_indices = @transform_3, window_bounds = array<i64: 32, 64>}]} {
    %c0 = arith.constant 0 : index
    %c0_0 = arith.constant 0 : index
    %0 = vector.load %arg1[%c0, %c0_0] : memref<32x64xf32, #tpu.memory_space<vmem>>, vector<32x64xf32>
    %1 = arith.truncf %0 : vector<32x64xf32> to vector<32x64xbf16>
    %c0_1 = arith.constant 0 : index
    %c0_2 = arith.constant 0 : index
    %2 = vector.load %arg2[%c0_1, %c0_2] : memref<992x256xbf16, #tpu.memory_space<vmem>>, vector<64x256xbf16>
    %cst = arith.constant dense<0.000000e+00> : vector<32x256xf32>
    %3 = tpu.matmul %1, %2, %cst {dimension_numbers = #tpu.dot_dimension_numbers<[1], [0], [0], [1], [0, 0, 1, 1], [], []>} : vector<32x64xbf16>, vector<64x256xbf16>, vector<32x256xf32> -> vector<32x256xf32>
    %c0_3 = arith.constant 0 : index
    %c0_4 = arith.constant 0 : index
    %4 = vector.load %arg3[%c0_3, %c0_4] : memref<8x256xf32, #tpu.memory_space<vmem>>, vector<1x256xf32>
    %5 = vector.broadcast %4 : vector<1x256xf32> to vector<32x256xf32>
    %6 = arith.addf %3, %5 : vector<32x256xf32>
    %cst_5 = arith.constant 0.000000e+00 : f32
    %7 = vector.broadcast %cst_5 : f32 to vector<32x256xf32>
    %8 = arith.maximumf %6, %7 : vector<32x256xf32>
    %9 = arith.truncf %8 : vector<32x256xf32> to vector<32x256xbf16>
    %c64 = arith.constant 64 : index
    %c0_6 = arith.constant 0 : index
    %10 = vector.load %arg2[%c64, %c0_6] : memref<992x256xbf16, #tpu.memory_space<vmem>>, vector<256x128xbf16>
    %cst_7 = arith.constant dense<0.000000e+00> : vector<32x128xf32>
    %11 = tpu.matmul %9, %10, %cst_7 {dimension_numbers = #tpu.dot_dimension_numbers<[1], [0], [0], [1], [0, 0, 1, 1], [], []>} : vector<32x256xbf16>, vector<256x128xbf16>, vector<32x128xf32> -> vector<32x128xf32>
    %c1 = arith.constant 1 : index
    %c0_8 = arith.constant 0 : index
    %12 = vector.load %arg3[%c1, %c0_8] : memref<8x256xf32, #tpu.memory_space<vmem>>, vector<1x128xf32>
    %13 = vector.broadcast %12 : vector<1x128xf32> to vector<32x128xf32>
    %14 = arith.addf %11, %13 : vector<32x128xf32>
    %cst_9 = arith.constant 0.000000e+00 : f32
    %15 = vector.broadcast %cst_9 : f32 to vector<32x128xf32>
    %16 = arith.maximumf %14, %15 : vector<32x128xf32>
    %17 = arith.truncf %16 : vector<32x128xf32> to vector<32x128xbf16>
    %c320 = arith.constant 320 : index
    %c0_10 = arith.constant 0 : index
    %18 = vector.load %arg2[%c320, %c0_10] : memref<992x256xbf16, #tpu.memory_space<vmem>>, vector<128x64xbf16>
    %cst_11 = arith.constant dense<0.000000e+00> : vector<32x64xf32>
    %19 = tpu.matmul %17, %18, %cst_11 {dimension_numbers = #tpu.dot_dimension_numbers<[1], [0], [0], [1], [0, 0, 1, 1], [], []>} : vector<32x128xbf16>, vector<128x64xbf16>, vector<32x64xf32> -> vector<32x64xf32>
    %c2 = arith.constant 2 : index
    %c0_12 = arith.constant 0 : index
    %20 = vector.load %arg3[%c2, %c0_12] : memref<8x256xf32, #tpu.memory_space<vmem>>, vector<1x64xf32>
    %21 = vector.broadcast %20 : vector<1x64xf32> to vector<32x64xf32>
    %22 = arith.addf %19, %21 : vector<32x64xf32>
    %cst_13 = arith.constant 0.000000e+00 : f32
    %23 = vector.broadcast %cst_13 : f32 to vector<32x64xf32>
    %24 = arith.maximumf %22, %23 : vector<32x64xf32>
    %25 = arith.truncf %24 : vector<32x64xf32> to vector<32x64xbf16>
    %c448 = arith.constant 448 : index
    %c0_14 = arith.constant 0 : index
    %26 = vector.load %arg2[%c448, %c0_14] : memref<992x256xbf16, #tpu.memory_space<vmem>>, vector<64x32xbf16>
    %cst_15 = arith.constant dense<0.000000e+00> : vector<32x32xf32>
    %27 = tpu.matmul %25, %26, %cst_15 {dimension_numbers = #tpu.dot_dimension_numbers<[1], [0], [0], [1], [0, 0, 1, 1], [], []>} : vector<32x64xbf16>, vector<64x32xbf16>, vector<32x32xf32> -> vector<32x32xf32>
    %c3 = arith.constant 3 : index
    %c0_16 = arith.constant 0 : index
    %28 = vector.load %arg3[%c3, %c0_16] : memref<8x256xf32, #tpu.memory_space<vmem>>, vector<1x32xf32>
    %29 = vector.broadcast %28 : vector<1x32xf32> to vector<32x32xf32>
    %30 = arith.addf %27, %29 : vector<32x32xf32>
    %cst_17 = arith.constant 0.000000e+00 : f32
    %31 = vector.broadcast %cst_17 : f32 to vector<32x32xf32>
    %32 = arith.maximumf %30, %31 : vector<32x32xf32>
    %33 = arith.truncf %32 : vector<32x32xf32> to vector<32x32xbf16>
    %c512 = arith.constant 512 : index
    %c0_18 = arith.constant 0 : index
    %34 = vector.load %arg2[%c512, %c0_18] : memref<992x256xbf16, #tpu.memory_space<vmem>>, vector<32x64xbf16>
    %cst_19 = arith.constant dense<0.000000e+00> : vector<32x64xf32>
    %35 = tpu.matmul %33, %34, %cst_19 {dimension_numbers = #tpu.dot_dimension_numbers<[1], [0], [0], [1], [0, 0, 1, 1], [], []>} : vector<32x32xbf16>, vector<32x64xbf16>, vector<32x64xf32> -> vector<32x64xf32>
    %c4 = arith.constant 4 : index
    %c0_20 = arith.constant 0 : index
    %36 = vector.load %arg3[%c4, %c0_20] : memref<8x256xf32, #tpu.memory_space<vmem>>, vector<1x64xf32>
    %37 = vector.broadcast %36 : vector<1x64xf32> to vector<32x64xf32>
    %38 = arith.addf %35, %37 : vector<32x64xf32>
    %cst_21 = arith.constant 0.000000e+00 : f32
    %39 = vector.broadcast %cst_21 : f32 to vector<32x64xf32>
    %40 = arith.maximumf %38, %39 : vector<32x64xf32>
    %41 = arith.truncf %40 : vector<32x64xf32> to vector<32x64xbf16>
    %c544 = arith.constant 544 : index
    %c0_22 = arith.constant 0 : index
    %42 = vector.load %arg2[%c544, %c0_22] : memref<992x256xbf16, #tpu.memory_space<vmem>>, vector<64x128xbf16>
    %cst_23 = arith.constant dense<0.000000e+00> : vector<32x128xf32>
    %43 = tpu.matmul %41, %42, %cst_23 {dimension_numbers = #tpu.dot_dimension_numbers<[1], [0], [0], [1], [0, 0, 1, 1], [], []>} : vector<32x64xbf16>, vector<64x128xbf16>, vector<32x128xf32> -> vector<32x128xf32>
    %c5 = arith.constant 5 : index
    %c0_24 = arith.constant 0 : index
    %44 = vector.load %arg3[%c5, %c0_24] : memref<8x256xf32, #tpu.memory_space<vmem>>, vector<1x128xf32>
    %45 = vector.broadcast %44 : vector<1x128xf32> to vector<32x128xf32>
    %46 = arith.addf %43, %45 : vector<32x128xf32>
    %cst_25 = arith.constant 0.000000e+00 : f32
    %47 = vector.broadcast %cst_25 : f32 to vector<32x128xf32>
    %48 = arith.maximumf %46, %47 : vector<32x128xf32>
    %49 = arith.truncf %48 : vector<32x128xf32> to vector<32x128xbf16>
    %c608 = arith.constant 608 : index
    %c0_26 = arith.constant 0 : index
    %50 = vector.load %arg2[%c608, %c0_26] : memref<992x256xbf16, #tpu.memory_space<vmem>>, vector<128x256xbf16>
    %cst_27 = arith.constant dense<0.000000e+00> : vector<32x256xf32>
    %51 = tpu.matmul %49, %50, %cst_27 {dimension_numbers = #tpu.dot_dimension_numbers<[1], [0], [0], [1], [0, 0, 1, 1], [], []>} : vector<32x128xbf16>, vector<128x256xbf16>, vector<32x256xf32> -> vector<32x256xf32>
    %c6 = arith.constant 6 : index
    %c0_28 = arith.constant 0 : index
    %52 = vector.load %arg3[%c6, %c0_28] : memref<8x256xf32, #tpu.memory_space<vmem>>, vector<1x256xf32>
    %53 = vector.broadcast %52 : vector<1x256xf32> to vector<32x256xf32>
    %54 = arith.addf %51, %53 : vector<32x256xf32>
    %cst_29 = arith.constant 0.000000e+00 : f32
    %55 = vector.broadcast %cst_29 : f32 to vector<32x256xf32>
    %56 = arith.maximumf %54, %55 : vector<32x256xf32>
    %57 = arith.truncf %56 : vector<32x256xf32> to vector<32x256xbf16>
    %c736 = arith.constant 736 : index
    %c0_30 = arith.constant 0 : index
    %58 = vector.load %arg2[%c736, %c0_30] : memref<992x256xbf16, #tpu.memory_space<vmem>>, vector<256x64xbf16>
    %cst_31 = arith.constant dense<0.000000e+00> : vector<32x64xf32>
    %59 = tpu.matmul %57, %58, %cst_31 {dimension_numbers = #tpu.dot_dimension_numbers<[1], [0], [0], [1], [0, 0, 1, 1], [], []>} : vector<32x256xbf16>, vector<256x64xbf16>, vector<32x64xf32> -> vector<32x64xf32>
    %c7 = arith.constant 7 : index
    %c0_32 = arith.constant 0 : index
    %60 = vector.load %arg3[%c7, %c0_32] : memref<8x256xf32, #tpu.memory_space<vmem>>, vector<1x64xf32>
    %61 = vector.broadcast %60 : vector<1x64xf32> to vector<32x64xf32>
    %62 = arith.addf %59, %61 : vector<32x64xf32>
    %63 = arith.truncf %62 : vector<32x64xf32> to vector<32x64xbf16>
    %c0_33 = arith.constant 0 : index
    %c0_34 = arith.constant 0 : index
    %64 = vector.load %arg4[%c0_33, %c0_34] : memref<32x64xbf16, #tpu.memory_space<vmem>>, vector<32x64xbf16>
    tpu.vector_store %arg4[%c0_33, %c0_34], %63 {strides = array<i32>} : memref<32x64xbf16, #tpu.memory_space<vmem>>, vector<32x64xbf16>,
    return
  }
  func.func @transform_0(%arg0: i32) -> (i32, i32) {
    %c0_i32 = arith.constant 0 : i32
    %c0_i32_0 = arith.constant 0 : i32
    return %arg0, %c0_i32 : i32, i32
  }
  func.func @transform_1(%arg0: i32) -> (i32, i32) {
    %c0_i32 = arith.constant 0 : i32
    %c0_i32_0 = arith.constant 0 : i32
    %c0_i32_1 = arith.constant 0 : i32
    return %c0_i32, %c0_i32_0 : i32, i32
  }
  func.func @transform_2(%arg0: i32) -> (i32, i32) {
    %c0_i32 = arith.constant 0 : i32
    %c0_i32_0 = arith.constant 0 : i32
    %c0_i32_1 = arith.constant 0 : i32
    return %c0_i32, %c0_i32_0 : i32, i32
  }
  func.func @transform_3(%arg0: i32) -> (i32, i32) {
    %c0_i32 = arith.constant 0 : i32
    %c0_i32_0 = arith.constant 0 : i32
    return %arg0, %c0_i32 : i32, i32
  }
}

</mosaic_0001>

<llo_original>
// kernel: tpu_custom_call.1
$region0: #{tpu_custom_call.1}
  #allocation0 [shape = 'u32[]', space=smem, size = 0x4, offset = 0x4, fixed_abs, tag = 'smem constant byte address 0x4 - core index']
  #allocation1 [shape = 'u32[72,128]{1,0:T(1,128)}', space=vmem, size = 0x9000, scoped, tag = 'internal scratch']
  %s0 = inlined_call_operand.hbm [shape: f32[32,64], index: 0, kind: input, shape index: {}]
  %s1 = inlined_call_operand.hbm [shape: bf16[992,256], index: 1, kind: input, shape index: {}]
  %s2 = inlined_call_operand.hbm [shape: f32[8,256], index: 2, kind: input, shape index: {}]
  %s3 = inlined_call_operand.hbm [shape: bf16[32,64], index: 3, kind: output, shape index: {}]
  %s4 = sld [smem:[#allocation0]]
  $region34: #{tpu_custom_call.1} parent=0
    _
  %s6 = ssub.s32 1, %s4
  %s7 = scalar_select 0, %s6, %s4
  $region1: #{tpu_custom_call.1} parent=0
    #allocation2 [shape = 'u8[16384]{0}', space=vmem, size = 0x4000, scoped, tag = 'input window, operand 0, single buffered']
    #allocation3 [shape = 's32[1]{0}', space=sflag, size = 0x4, scoped, tag = 'scoped memory for tpu_custom_call.1']
    #allocation4 [shape = 's32[1]{0}', space=sflag, size = 0x4, scoped, tag = 'scoped memory for tpu_custom_call.1']
    #allocation5 [shape = 'u8[507904]{0}', space=vmem, size = 0x7c000, scoped, tag = 'input window, operand 1, single buffered']
    #allocation6 [shape = 's32[1]{0}', space=sflag, size = 0x4, scoped, tag = 'scoped memory for tpu_custom_call.1']
    #allocation7 [shape = 'u8[8192]{0}', space=vmem, size = 0x2000, scoped, tag = 'input window, operand 2, single buffered']
    #allocation8 [shape = 'u8[8192]{0}', space=vmem, size = 0x2000, scoped, tag = 'output window, operand 0, single buffered']
    %8 = vsyncpa [#allocation3], 0
    %9 = vsyncpa [#allocation6], 0
    %10 = vsyncpa [#allocation4], 0
    // Predicated region
    $region2: #{tpu_custom_call.1} parent=1 // pred_check
      _
    $region3: #{tpu_custom_call.1} parent=1 // pred_check_branch
      %12 = sbr.rel (0) target = $region5
    $region4: #{tpu_custom_call.1} parent=1 // pred_region
      %14 = vsyncadd [#allocation3], 0
      %s15 = sshll.u32 %s0, 4
      %s16 = int_to_ptr.hbm [resolvable:$true] %s15
      %s17 = sshll.u32 [#allocation2], 4
      %s18 = int_to_ptr.vmem [resolvable:$true] %s17
      %23 = dma.hbm_to_vmem [thread:$0]  %s16, 512, %s18, [#allocation3], 128, 128, 8
    $region5: #{tpu_custom_call.1} parent=1 // pred_fallthru
      _
    // Predicated region
    $region6: #{tpu_custom_call.1} parent=1 // pred_check
      _
    $region7: #{tpu_custom_call.1} parent=1 // pred_check_branch
      %25 = sbr.rel (0) target = $region9
    $region8: #{tpu_custom_call.1} parent=1 // pred_region
      %27 = vsyncadd [#allocation6], 0
      %s28 = sshll.u32 %s1, 4
      %s29 = int_to_ptr.hbm [resolvable:$true] %s28
      %s30 = sshll.u32 [#allocation5], 4
      %s31 = int_to_ptr.vmem [resolvable:$true] %s30
      %36 = dma.hbm_to_vmem [thread:$0]  %s29, 15872, %s31, [#allocation6], 128, 128, 8
    $region9: #{tpu_custom_call.1} parent=1 // pred_fallthru
      _
    // Predicated region
    $region10: #{tpu_custom_call.1} parent=1 // pred_check
      _
    $region11: #{tpu_custom_call.1} parent=1 // pred_check_branch
      %38 = sbr.rel (0) target = $region13
    $region12: #{tpu_custom_call.1} parent=1 // pred_region
      %40 = vsyncadd [#allocation6], 0
      %s42 = sshll.u32 %s2, 4
      %s43 = int_to_ptr.hbm [resolvable:$true] %s42
      %s44 = sshll.u32 [#allocation7], 4
      %s45 = int_to_ptr.vmem [resolvable:$true] %s44
      %47 = dma.hbm_to_vmem [thread:$0]  %s43, 256, %s45, [#allocation6]
    $region13: #{tpu_custom_call.1} parent=1 // pred_fallthru
      _
    // Predicated region
    $region14: #{tpu_custom_call.1} parent=1 // pred_check
      _
    $region15: #{tpu_custom_call.1} parent=1 // pred_check_branch
      %49 = sbr.rel (0) target = $region17
    $region16: #{tpu_custom_call.1} parent=1 // pred_region
      %51 = dma.done [#allocation3], 512
    $region17: #{tpu_custom_call.1} parent=1 // pred_fallthru
      _
    // Predicated region
    $region18: #{tpu_custom_call.1} parent=1 // pred_check
      _
    $region19: #{tpu_custom_call.1} parent=1 // pred_check_branch
      %53 = sbr.rel (0) target = $region21
    $region20: #{tpu_custom_call.1} parent=1 // pred_region
      %55 = dma.done [#allocation6], 15872
    $region21: #{tpu_custom_call.1} parent=1 // pred_fallthru
      _
    // Predicated region
    $region22: #{tpu_custom_call.1} parent=1 // pred_check
      _
    $region23: #{tpu_custom_call.1} parent=1 // pred_check_branch
      %57 = sbr.rel (0) target = $region25
    $region24: #{tpu_custom_call.1} parent=1 // pred_region
      %59 = dma.done [#allocation6], 256
    $region25: #{tpu_custom_call.1} parent=1 // pred_fallthru
      _
    %v61 = vld [vmem:[#allocation2] sm:$0xff]
    %v62 = vld [vmem:[#allocation2 + $0x8] sm:$0xff]
    %v63 = vld [vmem:[#allocation2 + $0x10] sm:$0xff]
    %v64 = vld [vmem:[#allocation2 + $0x18] sm:$0xff]
    %v65 = vpack.c.bf16 %v62, %v61
    %v66 = vpack.c.bf16 %v64, %v63
    %v67 = vld [vmem:[#allocation5] sm:$0xff]
    %v68 = vld [vmem:[#allocation5 + $0x8] sm:$0xff]
    %v69 = vld [vmem:[#allocation5 + $0x10] sm:$0xff]
    %v70 = vld [vmem:[#allocation5 + $0x18] sm:$0xff]
    %v71 = vld [vmem:[#allocation5 + $0x20] sm:$0xff]
    %v72 = vld [vmem:[#allocation5 + $0x28] sm:$0xff]
    %v73 = vld [vmem:[#allocation5 + $0x30] sm:$0xff]
    %v74 = vld [vmem:[#allocation5 + $0x38] sm:$0xff]
    %v75 = vld [vmem:[#allocation7] ss:$8 sm:$0x3]
    %v77 = vperm.slane %v75, 0
    %v78 = vperm.slane %v75, 1
    %v89 = vunpack.c.l.b16 %v67
    %v90 = vunpack.c.h.b16 %v67
    %v91 = vunpack.c.l.b16 %v68
    %v92 = vunpack.c.h.b16 %v68
    %v93 = vunpack.c.l.b16 %v69
    %v94 = vunpack.c.h.b16 %v69
    %v95 = vunpack.c.l.b16 %v70
    %v96 = vunpack.c.h.b16 %v70
    %v97 = vunpack.c.l.b16 %v71
    %v98 = vunpack.c.h.b16 %v71
    %v99 = vunpack.c.l.b16 %v72
    %v100 = vunpack.c.h.b16 %v72
    %v101 = vunpack.c.l.b16 %v73
    %v102 = vunpack.c.h.b16 %v73
    %v103 = vunpack.c.l.b16 %v74
    %v104 = vunpack.c.h.b16 %v74
    %v105 = vpack.c.b16 %v91, %v89
    %v106 = vpack.c.b16 %v92, %v90
    %v107 = vpack.c.b16 %v95, %v93
    %v108 = vpack.c.b16 %v96, %v94
    %v109 = vpack.c.b16 %v99, %v97
    %v110 = vpack.c.b16 %v100, %v98
    %v111 = vpack.c.b16 %v103, %v101
    %v112 = vpack.c.b16 %v104, %v102
    %vm121 = vcmask 523264
    %v123 = vsel %vm121, %v65, 0
    %v126 = vsel %vm121, %v66, 0
    %128 = vmatpush.bf16.msra.mxu0 0
    %129 = vmatpush.bf16.msra.mxu0 0
    %130 = vmatpush.bf16.msra.mxu0 0
    %131 = vmatpush.bf16.msra.mxu0 0
    %132 = vmatpush.bf16.msra.mxu0 %v111
    %133 = vmatpush.bf16.msra.mxu0 %v109
    %134 = vmatpush.bf16.msra.mxu0 %v107
    %135 = vmatpush.bf16.msra.mxu0 %v105
    %136 = vmatmul.bf16.gmra.mxu0 %v123
    %v137 = vpop.f32.mrf.mxu0
    %v138 = vadd.f32 %v77, %v137
    %v139 = vpop.f32.mrf.mxu0
    %v140 = vadd.f32 %v77, %v139
    %141 = vmatmul.bf16.gmra.mxu0 %v126
    %v142 = vpop.f32.mrf.mxu0
    %v143 = vadd.f32 %v77, %v142
    %v144 = vpop.f32.mrf.mxu0
    %v145 = vadd.f32 %v77, %v144
    %146 = vdwg.mxu0
    %147 = vmatpush.bf16.msra.mxu0 0
    %148 = vmatpush.bf16.msra.mxu0 0
    %149 = vmatpush.bf16.msra.mxu0 0
    %150 = vmatpush.bf16.msra.mxu0 0
    %151 = vmatpush.bf16.msra.mxu0 %v112
    %152 = vmatpush.bf16.msra.mxu0 %v110
    %153 = vmatpush.bf16.msra.mxu0 %v108
    %154 = vmatpush.bf16.msra.mxu0 %v106
    %155 = vmatmul.bf16.gmra.mxu0 %v123
    %v156 = vpop.f32.mrf.mxu0
    %v157 = vadd.f32 %v78, %v156
    %v158 = vpop.f32.mrf.mxu0
    %v159 = vadd.f32 %v78, %v158
    %160 = vmatmul.bf16.gmra.mxu0 %v126
    %v161 = vpop.f32.mrf.mxu0
    %v162 = vadd.f32 %v78, %v161
    %v163 = vpop.f32.mrf.mxu0
    %v164 = vadd.f32 %v78, %v163
    %165 = vdwg.mxu0
    %v166 = vmax.f32 %v138, 0.0
    %v167 = vmax.f32 %v157, 0.0
    %v168 = vmax.f32 %v140, 0.0
    %v169 = vmax.f32 %v159, 0.0
    %v170 = vmax.f32 %v143, 0.0
    %v171 = vmax.f32 %v162, 0.0
    %v172 = vmax.f32 %v145, 0.0
    %v173 = vmax.f32 %v164, 0.0
    %v174 = vpack.c.bf16 %v168, %v166
    %v175 = vpack.c.bf16 %v169, %v167
    %v176 = vpack.c.bf16 %v172, %v170
    %v177 = vpack.c.bf16 %v173, %v171
    %v178 = vld [vmem:[#allocation5 + $0x40] sm:$0xf]
    %v179 = vld [vmem:[#allocation5 + $0x48] sm:$0xf]
    %v180 = vld [vmem:[#allocation5 + $0x50] sm:$0xf]
    %v181 = vld [vmem:[#allocation5 + $0x58] sm:$0xf]
    %v182 = vld [vmem:[#allocation5 + $0x60] sm:$0xf]
    %v183 = vld [vmem:[#allocation5 + $0x68] sm:$0xf]
    %v184 = vld [vmem:[#allocation5 + $0x70] sm:$0xf]
    %v185 = vld [vmem:[#allocation5 + $0x78] sm:$0xf]
    %v186 = vld [vmem:[#allocation5 + $0x80] sm:$0xf]
    %v187 = vld [vmem:[#allocation5 + $0x88] sm:$0xf]
    %v188 = vld [vmem:[#allocation5 + $0x90] sm:$0xf]
    %v189 = vld [vmem:[#allocation5 + $0x98] sm:$0xf]
    %v190 = vld [vmem:[#allocation5 + $0xa0] sm:$0xf]
    %v191 = vld [vmem:[#allocation5 + $0xa8] sm:$0xf]
    %v192 = vld [vmem:[#allocation5 + $0xb0] sm:$0xf]
    %v193 = vld [vmem:[#allocation5 + $0xb8] sm:$0xf]
    %v194 = vld [vmem:[#allocation5 + $0xc0] sm:$0xf]
    %v195 = vld [vmem:[#allocation5 + $0xc8] sm:$0xf]
    %v196 = vld [vmem:[#allocation5 + $0xd0] sm:$0xf]
    %v197 = vld [vmem:[#allocation5 + $0xd8] sm:$0xf]
    %v198 = vld [vmem:[#allocation5 + $0xe0] sm:$0xf]
    %v199 = vld [vmem:[#allocation5 + $0xe8] sm:$0xf]
    %v200 = vld [vmem:[#allocation5 + $0xf0] sm:$0xf]
    %v201 = vld [vmem:[#allocation5 + $0xf8] sm:$0xf]
    %v202 = vld [vmem:[#allocation5 + $0x100] sm:$0xf]
    %v203 = vld [vmem:[#allocation5 + $0x108] sm:$0xf]
    %v204 = vld [vmem:[#allocation5 + $0x110] sm:$0xf]
    %v205 = vld [vmem:[#allocation5 + $0x118] sm:$0xf]
    %v206 = vld [vmem:[#allocation5 + $0x120] sm:$0xf]
    %v207 = vld [vmem:[#allocation5 + $0x128] sm:$0xf]
    %v208 = vld [vmem:[#allocation5 + $0x130] sm:$0xf]
    %v209 = vld [vmem:[#allocation5 + $0x138] sm:$0xf]
    %v210 = vld [vmem:[#allocation7 + $0x1] ss:$0 sm:$0xff]
    %v243 = vunpack.c.l.b16 %v178
    %v244 = vunpack.c.l.b16 %v179
    %v245 = vunpack.c.l.b16 %v180
    %v246 = vunpack.c.l.b16 %v181
    %v247 = vunpack.c.l.b16 %v182
    %v248 = vunpack.c.l.b16 %v183
    %v249 = vunpack.c.l.b16 %v184
    %v250 = vunpack.c.l.b16 %v185
    %v251 = vunpack.c.l.b16 %v186
    %v252 = vunpack.c.l.b16 %v187
    %v253 = vunpack.c.l.b16 %v188
    %v254 = vunpack.c.l.b16 %v189
    %v255 = vunpack.c.l.b16 %v190
    %v256 = vunpack.c.l.b16 %v191
    %v257 = vunpack.c.l.b16 %v192
    %v258 = vunpack.c.l.b16 %v193
    %v259 = vunpack.c.l.b16 %v194
    %v260 = vunpack.c.l.b16 %v195
    %v261 = vunpack.c.l.b16 %v196
    %v262 = vunpack.c.l.b16 %v197
    %v263 = vunpack.c.l.b16 %v198
    %v264 = vunpack.c.l.b16 %v199
    %v265 = vunpack.c.l.b16 %v200
    %v266 = vunpack.c.l.b16 %v201
    %v267 = vunpack.c.l.b16 %v202
    %v268 = vunpack.c.l.b16 %v203
    %v269 = vunpack.c.l.b16 %v204
    %v270 = vunpack.c.l.b16 %v205
    %v271 = vunpack.c.l.b16 %v206
    %v272 = vunpack.c.l.b16 %v207
    %v273 = vunpack.c.l.b16 %v208
    %v274 = vunpack.c.l.b16 %v209
    %v275 = vpack.c.b16 %v244, %v243
    %v276 = vpack.c.b16 %v246, %v245
    %v277 = vpack.c.b16 %v248, %v247
    %v278 = vpack.c.b16 %v250, %v249
    %v279 = vpack.c.b16 %v252, %v251
    %v280 = vpack.c.b16 %v254, %v253
    %v281 = vpack.c.b16 %v256, %v255
    %v282 = vpack.c.b16 %v258, %v257
    %v283 = vpack.c.b16 %v260, %v259
    %v284 = vpack.c.b16 %v262, %v261
    %v285 = vpack.c.b16 %v264, %v263
    %v286 = vpack.c.b16 %v266, %v265
    %v287 = vpack.c.b16 %v268, %v267
    %v288 = vpack.c.b16 %v270, %v269
    %v289 = vpack.c.b16 %v272, %v271
    %v290 = vpack.c.b16 %v274, %v273
    %307 = vmatpush.bf16.msra.mxu0 %v282
    %308 = vmatpush.bf16.msra.mxu0 %v281
    %309 = vmatpush.bf16.msra.mxu0 %v280
    %310 = vmatpush.bf16.msra.mxu0 %v279
    %311 = vmatpush.bf16.msra.mxu0 %v278
    %312 = vmatpush.bf16.msra.mxu0 %v277
    %313 = vmatpush.bf16.msra.mxu0 %v276
    %314 = vmatpush.bf16.msra.mxu0 %v275
    %315 = vmatmul.bf16.gmra.mxu0 %v174
    %v316 = vpop.f32.mrf.mxu0
    %v317 = vadd.f32 %v210, %v316
    %v318 = vpop.f32.mrf.mxu0
    %v319 = vadd.f32 %v210, %v318
    %320 = vmatmul.bf16.gmra.mxu0 %v176
    %v321 = vpop.f32.mrf.mxu0
    %v322 = vadd.f32 %v210, %v321
    %v323 = vpop.f32.mrf.mxu0
    %v324 = vadd.f32 %v210, %v323
    %325 = vdwg.mxu0
    %326 = vmatpush.bf16.msra.mxu0 %v290
    %327 = vmatpush.bf16.msra.mxu0 %v289
    %328 = vmatpush.bf16.msra.mxu0 %v288
    %329 = vmatpush.bf16.msra.mxu0 %v287
    %330 = vmatpush.bf16.msra.mxu0 %v286
    %331 = vmatpush.bf16.msra.mxu0 %v285
    %332 = vmatpush.bf16.msra.mxu0 %v284
    %333 = vmatpush.bf16.msra.mxu0 %v283
    %334 = vmatmul.bf16.gmra.mxu0 %v175
    %v335 = vpop.f32.mrf.mxu0
    %v336 = vadd.f32 %v317, %v335
    %v337 = vpop.f32.mrf.mxu0
    %v338 = vadd.f32 %v319, %v337
    %339 = vmatmul.bf16.gmra.mxu0 %v177
    %v340 = vpop.f32.mrf.mxu0
    %v341 = vadd.f32 %v322, %v340
    %v342 = vpop.f32.mrf.mxu0
    %v343 = vadd.f32 %v324, %v342
    %344 = vdwg.mxu0
    %v345 = vmax.f32 %v336, 0.0
    %v346 = vmax.f32 %v338, 0.0
    %v347 = vmax.f32 %v341, 0.0
    %v348 = vmax.f32 %v343, 0.0
    %v349 = vpack.c.bf16 %v346, %v345
    %v350 = vpack.c.bf16 %v348, %v347
    %v351 = vld [vmem:[#allocation5 + $0x140] sm:$0xf]
    %v352 = vld [vmem:[#allocation5 + $0x148] sm:$0xf]
    %v353 = vld [vmem:[#allocation5 + $0x150] sm:$0xf]
    %v354 = vld [vmem:[#allocation5 + $0x158] sm:$0xf]
    %v355 = vld [vmem:[#allocation5 + $0x160] sm:$0xf]
    %v356 = vld [vmem:[#allocation5 + $0x168] sm:$0xf]
    %v357 = vld [vmem:[#allocation5 + $0x170] sm:$0xf]
    %v358 = vld [vmem:[#allocation5 + $0x178] sm:$0xf]
    %v359 = vld [vmem:[#allocation5 + $0x180] sm:$0xf]
    %v360 = vld [vmem:[#allocation5 + $0x188] sm:$0xf]
    %v361 = vld [vmem:[#allocation5 + $0x190] sm:$0xf]
    %v362 = vld [vmem:[#allocation5 + $0x198] sm:$0xf]
    %v363 = vld [vmem:[#allocation5 + $0x1a0] sm:$0xf]
    %v364 = vld [vmem:[#allocation5 + $0x1a8] sm:$0xf]
    %v365 = vld [vmem:[#allocation5 + $0x1b0] sm:$0xf]
    %v366 = vld [vmem:[#allocation5 + $0x1b8] sm:$0xf]
    %v367 = vld [vmem:[#allocation7 + $0x2] ss:$0 sm:$0xff]
    %v384 = vunpack.c.l.b16 %v351
    %v385 = vunpack.c.l.b16 %v352
    %v386 = vunpack.c.l.b16 %v353
    %v387 = vunpack.c.l.b16 %v354
    %v388 = vunpack.c.l.b16 %v355
    %v389 = vunpack.c.l.b16 %v356
    %v390 = vunpack.c.l.b16 %v357
    %v391 = vunpack.c.l.b16 %v358
    %v392 = vunpack.c.l.b16 %v359
    %v393 = vunpack.c.l.b16 %v360
    %v394 = vunpack.c.l.b16 %v361
    %v395 = vunpack.c.l.b16 %v362
    %v396 = vunpack.c.l.b16 %v363
    %v397 = vunpack.c.l.b16 %v364
    %v398 = vunpack.c.l.b16 %v365
    %v399 = vunpack.c.l.b16 %v366
    %v400 = vpack.c.b16 %v385, %v384
    %v401 = vpack.c.b16 %v387, %v386
    %v402 = vpack.c.b16 %v389, %v388
    %v403 = vpack.c.b16 %v391, %v390
    %v404 = vpack.c.b16 %v393, %v392
    %v405 = vpack.c.b16 %v395, %v394
    %v406 = vpack.c.b16 %v397, %v396
    %v407 = vpack.c.b16 %v399, %v398
    %416 = vmatpush.bf16.msra.mxu0 %v407
    %417 = vmatpush.bf16.msra.mxu0 %v406
    %418 = vmatpush.bf16.msra.mxu0 %v405
    %419 = vmatpush.bf16.msra.mxu0 %v404
    %420 = vmatpush.bf16.msra.mxu0 %v403
    %421 = vmatpush.bf16.msra.mxu0 %v402
    %422 = vmatpush.bf16.msra.mxu0 %v401
    %423 = vmatpush.bf16.msra.mxu0 %v400
    %424 = vmatmul.bf16.gmra.mxu0 %v349
    %v425 = vpop.f32.mrf.mxu0
    %v426 = vadd.f32 %v367, %v425
    %v427 = vpop.f32.mrf.mxu0
    %v428 = vadd.f32 %v367, %v427
    %429 = vmatmul.bf16.gmra.mxu0 %v350
    %v430 = vpop.f32.mrf.mxu0
    %v431 = vadd.f32 %v367, %v430
    %v432 = vpop.f32.mrf.mxu0
    %v433 = vadd.f32 %v367, %v432
    %434 = vdwg.mxu0
    %v435 = vmax.f32 %v426, 0.0
    %v436 = vmax.f32 %v428, 0.0
    %v437 = vmax.f32 %v431, 0.0
    %v438 = vmax.f32 %v433, 0.0
    %v439 = vpack.c.bf16 %v436, %v435
    %v440 = vpack.c.bf16 %v438, %v437
    %v441 = vld [vmem:[#allocation5 + $0x1c0] sm:$0xf]
    %v442 = vld [vmem:[#allocation5 + $0x1c8] sm:$0xf]
    %v443 = vld [vmem:[#allocation5 + $0x1d0] sm:$0xf]
    %v444 = vld [vmem:[#allocation5 + $0x1d8] sm:$0xf]
    %v445 = vld [vmem:[#allocation5 + $0x1e0] sm:$0xf]
    %v446 = vld [vmem:[#allocation5 + $0x1e8] sm:$0xf]
    %v447 = vld [vmem:[#allocation5 + $0x1f0] sm:$0xf]
    %v448 = vld [vmem:[#allocation5 + $0x1f8] sm:$0xf]
    %v449 = vld [vmem:[#allocation7 + $0x3] ss:$0 sm:$0xff]
    %v458 = vunpack.c.l.b16 %v441
    %v459 = vunpack.c.l.b16 %v442
    %v460 = vunpack.c.l.b16 %v443
    %v461 = vunpack.c.l.b16 %v444
    %v462 = vunpack.c.l.b16 %v445
    %v463 = vunpack.c.l.b16 %v446
    %v464 = vunpack.c.l.b16 %v447
    %v465 = vunpack.c.l.b16 %v448
    %v466 = vpack.c.b16 %v459, %v458
    %v467 = vpack.c.b16 %v461, %v460
    %v468 = vpack.c.b16 %v463, %v462
    %v469 = vpack.c.b16 %v465, %v464
    %v475 = vsel %vm121, %v439, 0
    %v478 = vsel %vm121, %v440, 0
    %480 = vmatpush.bf16.msra.mxu0 0
    %481 = vmatpush.bf16.msra.mxu0 0
    %482 = vmatpush.bf16.msra.mxu0 0
    %483 = vmatpush.bf16.msra.mxu0 0
    %484 = vmatpush.bf16.msra.mxu0 %v469
    %485 = vmatpush.bf16.msra.mxu0 %v468
    %486 = vmatpush.bf16.msra.mxu0 %v467
    %487 = vmatpush.bf16.msra.mxu0 %v466
    %488 = vmatmul.bf16.gmra.mxu0 %v475
    %v489 = vpop.f32.mrf.mxu0
    %v490 = vadd.f32 %v449, %v489
    %v491 = vpop.f32.mrf.mxu0
    %v492 = vadd.f32 %v449, %v491
    %493 = vmatmul.bf16.gmra.mxu0 %v478
    %v494 = vpop.f32.mrf.mxu0
    %v495 = vadd.f32 %v449, %v494
    %v496 = vpop.f32.mrf.mxu0
    %v497 = vadd.f32 %v449, %v496
    %498 = vdwg.mxu0
    %v499 = vmax.f32 %v490, 0.0
    %v500 = vmax.f32 %v492, 0.0
    %v501 = vmax.f32 %v495, 0.0
    %v502 = vmax.f32 %v497, 0.0
    %v503 = vpack.c.bf16 %v500, %v499
    %v504 = vpack.c.bf16 %v502, %v501
    %v505 = vld [vmem:[#allocation5 + $0x200] sm:$0xf]
    %v506 = vld [vmem:[#allocation5 + $0x208] sm:$0xf]
    %v507 = vld [vmem:[#allocation5 + $0x210] sm:$0xf]
    %v508 = vld [vmem:[#allocation5 + $0x218] sm:$0xf]
    %v509 = vld [vmem:[#allocation7 + $0x4] ss:$0 sm:$0xff]
    %v514 = vunpack.c.l.b16 %v505
    %v515 = vunpack.c.l.b16 %v506
    %v516 = vunpack.c.l.b16 %v507
    %v517 = vunpack.c.l.b16 %v508
    %v518 = vpack.c.b16 %v515, %v514
    %v519 = vpack.c.b16 %v517, %v516
    %vm522 = vcmask 261120
    %v524 = vsel %vm522, %v503, 0
    %v527 = vsel %vm522, %v504, 0
    %529 = vmatpush.bf16.msra.mxu0 0
    %530 = vmatpush.bf16.msra.mxu0 0
    %531 = vmatpush.bf16.msra.mxu0 0
    %532 = vmatpush.bf16.msra.mxu0 0
    %533 = vmatpush.bf16.msra.mxu0 0
    %534 = vmatpush.bf16.msra.mxu0 0
    %535 = vmatpush.bf16.msra.mxu0 %v519
    %536 = vmatpush.bf16.msra.mxu0 %v518
    %537 = vmatmul.bf16.gmra.mxu0 %v524
    %v538 = vpop.f32.mrf.mxu0
    %v539 = vadd.f32 %v509, %v538
    %v540 = vpop.f32.mrf.mxu0
    %v541 = vadd.f32 %v509, %v540
    %542 = vmatmul.bf16.gmra.mxu0 %v527
    %v543 = vpop.f32.mrf.mxu0
    %v544 = vadd.f32 %v509, %v543
    %v545 = vpop.f32.mrf.mxu0
    %v546 = vadd.f32 %v509, %v545
    %547 = vdwg.mxu0
    %v548 = vmax.f32 %v539, 0.0
    %v549 = vmax.f32 %v541, 0.0
    %v550 = vmax.f32 %v544, 0.0
    %v551 = vmax.f32 %v546, 0.0
    %v552 = vpack.c.bf16 %v549, %v548
    %v553 = vpack.c.bf16 %v551, %v550
    %v554 = vld [vmem:[#allocation5 + $0x220] sm:$0xf]
    %v555 = vld [vmem:[#allocation5 + $0x228] sm:$0xf]
    %v556 = vld [vmem:[#allocation5 + $0x230] sm:$0xf]
    %v557 = vld [vmem:[#allocation5 + $0x238] sm:$0xf]
    %v558 = vld [vmem:[#allocation5 + $0x240] sm:$0xf]
    %v559 = vld [vmem:[#allocation5 + $0x248] sm:$0xf]
    %v560 = vld [vmem:[#allocation5 + $0x250] sm:$0xf]
    %v561 = vld [vmem:[#allocation5 + $0x258] sm:$0xf]
    %v562 = vld [vmem:[#allocation7 + $0x5] ss:$0 sm:$0xff]
    %v571 = vunpack.c.l.b16 %v554
    %v572 = vunpack.c.l.b16 %v555
    %v573 = vunpack.c.l.b16 %v556
    %v574 = vunpack.c.l.b16 %v557
    %v575 = vunpack.c.l.b16 %v558
    %v576 = vunpack.c.l.b16 %v559
    %v577 = vunpack.c.l.b16 %v560
    %v578 = vunpack.c.l.b16 %v561
    %v579 = vpack.c.b16 %v572, %v571
    %v580 = vpack.c.b16 %v574, %v573
    %v581 = vpack.c.b16 %v576, %v575
    %v582 = vpack.c.b16 %v578, %v577
    %v588 = vsel %vm121, %v552, 0
    %v591 = vsel %vm121, %v553, 0
    %593 = vmatpush.bf16.msra.mxu0 0
    %594 = vmatpush.bf16.msra.mxu0 0
    %595 = vmatpush.bf16.msra.mxu0 0
    %596 = vmatpush.bf16.msra.mxu0 0
    %597 = vmatpush.bf16.msra.mxu0 %v582
    %598 = vmatpush.bf16.msra.mxu0 %v581
    %599 = vmatpush.bf16.msra.mxu0 %v580
    %600 = vmatpush.bf16.msra.mxu0 %v579
    %601 = vmatmul.bf16.gmra.mxu0 %v588
    %v602 = vpop.f32.mrf.mxu0
    %v603 = vadd.f32 %v562, %v602
    %v604 = vpop.f32.mrf.mxu0
    %v605 = vadd.f32 %v562, %v604
    %606 = vmatmul.bf16.gmra.mxu0 %v591
    %v607 = vpop.f32.mrf.mxu0
    %v608 = vadd.f32 %v562, %v607
    %v609 = vpop.f32.mrf.mxu0
    %v610 = vadd.f32 %v562, %v609
    %611 = vdwg.mxu0
    %v612 = vmax.f32 %v603, 0.0
    %v613 = vmax.f32 %v605, 0.0
    %v614 = vmax.f32 %v608, 0.0
    %v615 = vmax.f32 %v610, 0.0
    %v616 = vpack.c.bf16 %v613, %v612
    %v617 = vpack.c.bf16 %v615, %v614
    %v618 = vld [vmem:[#allocation5 + $0x260] sm:$0xff]
    %v619 = vld [vmem:[#allocation5 + $0x268] sm:$0xff]
    %v620 = vld [vmem:[#allocation5 + $0x270] sm:$0xff]
    %v621 = vld [vmem:[#allocation5 + $0x278] sm:$0xff]
    %v622 = vld [vmem:[#allocation5 + $0x280] sm:$0xff]
    %v623 = vld [vmem:[#allocation5 + $0x288] sm:$0xff]
    %v624 = vld [vmem:[#allocation5 + $0x290] sm:$0xff]
    %v625 = vld [vmem:[#allocation5 + $0x298] sm:$0xff]
    %v626 = vld [vmem:[#allocation5 + $0x2a0] sm:$0xff]
    %v627 = vld [vmem:[#allocation5 + $0x2a8] sm:$0xff]
    %v628 = vld [vmem:[#allocation5 + $0x2b0] sm:$0xff]
    %v629 = vld [vmem:[#allocation5 + $0x2b8] sm:$0xff]
    %v630 = vld [vmem:[#allocation5 + $0x2c0] sm:$0xff]
    %v631 = vld [vmem:[#allocation5 + $0x2c8] sm:$0xff]
    %v632 = vld [vmem:[#allocation5 + $0x2d0] sm:$0xff]
    %v633 = vld [vmem:[#allocation5 + $0x2d8] sm:$0xff]
    %s634 = scalar_lea.vmem [#allocation7], 6
    %v635 = vld [vmem:[%s634] ss:$8 sm:$0x3]
    %v637 = vperm.slane %v635, 0
    %v638 = vperm.slane %v635, 1
    %v657 = vunpack.c.l.b16 %v618
    %v658 = vunpack.c.h.b16 %v618
    %v659 = vunpack.c.l.b16 %v619
    %v660 = vunpack.c.h.b16 %v619
    %v661 = vunpack.c.l.b16 %v620
    %v662 = vunpack.c.h.b16 %v620
    %v663 = vunpack.c.l.b16 %v621
    %v664 = vunpack.c.h.b16 %v621
    %v665 = vunpack.c.l.b16 %v622
    %v666 = vunpack.c.h.b16 %v622
    %v667 = vunpack.c.l.b16 %v623
    %v668 = vunpack.c.h.b16 %v623
    %v669 = vunpack.c.l.b16 %v624
    %v670 = vunpack.c.h.b16 %v624
    %v671 = vunpack.c.l.b16 %v625
    %v672 = vunpack.c.h.b16 %v625
    %v673 = vunpack.c.l.b16 %v626
    %v674 = vunpack.c.h.b16 %v626
    %v675 = vunpack.c.l.b16 %v627
    %v676 = vunpack.c.h.b16 %v627
    %v677 = vunpack.c.l.b16 %v628
    %v678 = vunpack.c.h.b16 %v628
    %v679 = vunpack.c.l.b16 %v629
    %v680 = vunpack.c.h.b16 %v629
    %v681 = vunpack.c.l.b16 %v630
    %v682 = vunpack.c.h.b16 %v630
    %v683 = vunpack.c.l.b16 %v631
    %v684 = vunpack.c.h.b16 %v631
    %v685 = vunpack.c.l.b16 %v632
    %v686 = vunpack.c.h.b16 %v632
    %v687 = vunpack.c.l.b16 %v633
    %v688 = vunpack.c.h.b16 %v633
    %v689 = vpack.c.b16 %v659, %v657
    %v690 = vpack.c.b16 %v660, %v658
    %v691 = vpack.c.b16 %v663, %v661
    %v692 = vpack.c.b16 %v664, %v662
    %v693 = vpack.c.b16 %v667, %v665
    %v694 = vpack.c.b16 %v668, %v666
    %v695 = vpack.c.b16 %v671, %v669
    %v696 = vpack.c.b16 %v672, %v670
    %v697 = vpack.c.b16 %v675, %v673
    %v698 = vpack.c.b16 %v676, %v674
    %v699 = vpack.c.b16 %v679, %v677
    %v700 = vpack.c.b16 %v680, %v678
    %v701 = vpack.c.b16 %v683, %v681
    %v702 = vpack.c.b16 %v684, %v682
    %v703 = vpack.c.b16 %v687, %v685
    %v704 = vpack.c.b16 %v688, %v686
    %721 = vmatpush.bf16.msra.mxu0 %v703
    %722 = vmatpush.bf16.msra.mxu0 %v701
    %723 = vmatpush.bf16.msra.mxu0 %v699
    %724 = vmatpush.bf16.msra.mxu0 %v697
    %725 = vmatpush.bf16.msra.mxu0 %v695
    %726 = vmatpush.bf16.msra.mxu0 %v693
    %727 = vmatpush.bf16.msra.mxu0 %v691
    %728 = vmatpush.bf16.msra.mxu0 %v689
    %729 = vmatmul.bf16.gmra.mxu0 %v616
    %v730 = vpop.f32.mrf.mxu0
    %v731 = vadd.f32 %v637, %v730
    %v732 = vpop.f32.mrf.mxu0
    %v733 = vadd.f32 %v637, %v732
    %734 = vmatmul.bf16.gmra.mxu0 %v617
    %v735 = vpop.f32.mrf.mxu0
    %v736 = vadd.f32 %v637, %v735
    %v737 = vpop.f32.mrf.mxu0
    %v738 = vadd.f32 %v637, %v737
    %739 = vdwg.mxu0
    %740 = vmatpush.bf16.msra.mxu0 %v704
    %741 = vmatpush.bf16.msra.mxu0 %v702
    %742 = vmatpush.bf16.msra.mxu0 %v700
    %743 = vmatpush.bf16.msra.mxu0 %v698
    %744 = vmatpush.bf16.msra.mxu0 %v696
    %745 = vmatpush.bf16.msra.mxu0 %v694
    %746 = vmatpush.bf16.msra.mxu0 %v692
    %747 = vmatpush.bf16.msra.mxu0 %v690
    %748 = vmatmul.bf16.gmra.mxu0 %v616
    %v749 = vpop.f32.mrf.mxu0
    %v750 = vadd.f32 %v638, %v749
    %v751 = vpop.f32.mrf.mxu0
    %v752 = vadd.f32 %v638, %v751
    %753 = vmatmul.bf16.gmra.mxu0 %v617
    %v754 = vpop.f32.mrf.mxu0
    %v755 = vadd.f32 %v638, %v754
    %v756 = vpop.f32.mrf.mxu0
    %v757 = vadd.f32 %v638, %v756
    %758 = vdwg.mxu0
    %v759 = vmax.f32 %v731, 0.0
    %v760 = vmax.f32 %v750, 0.0
    %v761 = vmax.f32 %v733, 0.0
    %v762 = vmax.f32 %v752, 0.0
    %v763 = vmax.f32 %v736, 0.0
    %v764 = vmax.f32 %v755, 0.0
    %v765 = vmax.f32 %v738, 0.0
    %v766 = vmax.f32 %v757, 0.0
    %v767 = vpack.c.bf16 %v761, %v759
    %v768 = vpack.c.bf16 %v762, %v760
    %v769 = vpack.c.bf16 %v765, %v763
    %v770 = vpack.c.bf16 %v766, %v764
    %v771 = vld [vmem:[#allocation5 + $0x2e0] sm:$0xf]
    %v772 = vld [vmem:[#allocation5 + $0x2e8] sm:$0xf]
    %v773 = vld [vmem:[#allocation5 + $0x2f0] sm:$0xf]
    %v774 = vld [vmem:[#allocation5 + $0x2f8] sm:$0xf]
    %v775 = vld [vmem:[#allocation5 + $0x300] sm:$0xf]
    %v776 = vld [vmem:[#allocation5 + $0x308] sm:$0xf]
    %v777 = vld [vmem:[#allocation5 + $0x310] sm:$0xf]
    %v778 = vld [vmem:[#allocation5 + $0x318] sm:$0xf]
    %v779 = vld [vmem:[#allocation5 + $0x320] sm:$0xf]
    %v780 = vld [vmem:[#allocation5 + $0x328] sm:$0xf]
    %v781 = vld [vmem:[#allocation5 + $0x330] sm:$0xf]
    %v782 = vld [vmem:[#allocation5 + $0x338] sm:$0xf]
    %v783 = vld [vmem:[#allocation5 + $0x340] sm:$0xf]
    %v784 = vld [vmem:[#allocation5 + $0x348] sm:$0xf]
    %v785 = vld [vmem:[#allocation5 + $0x350] sm:$0xf]
    %v786 = vld [vmem:[#allocation5 + $0x358] sm:$0xf]
    %v787 = vld [vmem:[#allocation5 + $0x360] sm:$0xf]
    %v788 = vld [vmem:[#allocation5 + $0x368] sm:$0xf]
    %v789 = vld [vmem:[#allocation5 + $0x370] sm:$0xf]
    %v790 = vld [vmem:[#allocation5 + $0x378] sm:$0xf]
    %v791 = vld [vmem:[#allocation5 + $0x380] sm:$0xf]
    %v792 = vld [vmem:[#allocation5 + $0x388] sm:$0xf]
    %v793 = vld [vmem:[#allocation5 + $0x390] sm:$0xf]
    %v794 = vld [vmem:[#allocation5 + $0x398] sm:$0xf]
    %v795 = vld [vmem:[#allocation5 + $0x3a0] sm:$0xf]
    %v796 = vld [vmem:[#allocation5 + $0x3a8] sm:$0xf]
    %v797 = vld [vmem:[#allocation5 + $0x3b0] sm:$0xf]
    %v798 = vld [vmem:[#allocation5 + $0x3b8] sm:$0xf]
    %v799 = vld [vmem:[#allocation5 + $0x3c0] sm:$0xf]
    %v800 = vld [vmem:[#allocation5 + $0x3c8] sm:$0xf]
    %v801 = vld [vmem:[#allocation5 + $0x3d0] sm:$0xf]
    %v802 = vld [vmem:[#allocation5 + $0x3d8] sm:$0xf]
    %v803 = vld [vmem:[#allocation7 + $0x7] ss:$0 sm:$0xff]
    %v836 = vunpack.c.l.b16 %v771
    %v837 = vunpack.c.l.b16 %v772
    %v838 = vunpack.c.l.b16 %v773
    %v839 = vunpack.c.l.b16 %v774
    %v840 = vunpack.c.l.b16 %v775
    %v841 = vunpack.c.l.b16 %v776
    %v842 = vunpack.c.l.b16 %v777
    %v843 = vunpack.c.l.b16 %v778
    %v844 = vunpack.c.l.b16 %v779
    %v845 = vunpack.c.l.b16 %v780
    %v846 = vunpack.c.l.b16 %v781
    %v847 = vunpack.c.l.b16 %v782
    %v848 = vunpack.c.l.b16 %v783
    %v849 = vunpack.c.l.b16 %v784
    %v850 = vunpack.c.l.b16 %v785
    %v851 = vunpack.c.l.b16 %v786
    %v852 = vunpack.c.l.b16 %v787
    %v853 = vunpack.c.l.b16 %v788
    %v854 = vunpack.c.l.b16 %v789
    %v855 = vunpack.c.l.b16 %v790
    %v856 = vunpack.c.l.b16 %v791
    %v857 = vunpack.c.l.b16 %v792
    %v858 = vunpack.c.l.b16 %v793
    %v859 = vunpack.c.l.b16 %v794
    %v860 = vunpack.c.l.b16 %v795
    %v861 = vunpack.c.l.b16 %v796
    %v862 = vunpack.c.l.b16 %v797
    %v863 = vunpack.c.l.b16 %v798
    %v864 = vunpack.c.l.b16 %v799
    %v865 = vunpack.c.l.b16 %v800
    %v866 = vunpack.c.l.b16 %v801
    %v867 = vunpack.c.l.b16 %v802
    %v868 = vpack.c.b16 %v837, %v836
    %v869 = vpack.c.b16 %v839, %v838
    %v870 = vpack.c.b16 %v841, %v840
    %v871 = vpack.c.b16 %v843, %v842
    %v872 = vpack.c.b16 %v845, %v844
    %v873 = vpack.c.b16 %v847, %v846
    %v874 = vpack.c.b16 %v849, %v848
    %v875 = vpack.c.b16 %v851, %v850
    %v876 = vpack.c.b16 %v853, %v852
    %v877 = vpack.c.b16 %v855, %v854
    %v878 = vpack.c.b16 %v857, %v856
    %v879 = vpack.c.b16 %v859, %v858
    %v880 = vpack.c.b16 %v861, %v860
    %v881 = vpack.c.b16 %v863, %v862
    %v882 = vpack.c.b16 %v865, %v864
    %v883 = vpack.c.b16 %v867, %v866
    %900 = vmatpush.bf16.msra.mxu0 %v875
    %901 = vmatpush.bf16.msra.mxu0 %v874
    %902 = vmatpush.bf16.msra.mxu0 %v873
    %903 = vmatpush.bf16.msra.mxu0 %v872
    %904 = vmatpush.bf16.msra.mxu0 %v871
    %905 = vmatpush.bf16.msra.mxu0 %v870
    %906 = vmatpush.bf16.msra.mxu0 %v869
    %907 = vmatpush.bf16.msra.mxu0 %v868
    %908 = vmatmul.bf16.gmra.mxu0 %v767
    %v909 = vpop.f32.mrf.mxu0
    %v910 = vadd.f32 %v803, %v909
    %v911 = vpop.f32.mrf.mxu0
    %v912 = vadd.f32 %v803, %v911
    %913 = vmatmul.bf16.gmra.mxu0 %v769
    %v914 = vpop.f32.mrf.mxu0
    %v915 = vadd.f32 %v803, %v914
    %v916 = vpop.f32.mrf.mxu0
    %v917 = vadd.f32 %v803, %v916
    %918 = vdwg.mxu0
    %919 = vmatpush.bf16.msra.mxu0 %v883
    %920 = vmatpush.bf16.msra.mxu0 %v882
    %921 = vmatpush.bf16.msra.mxu0 %v881
    %922 = vmatpush.bf16.msra.mxu0 %v880
    %923 = vmatpush.bf16.msra.mxu0 %v879
    %924 = vmatpush.bf16.msra.mxu0 %v878
    %925 = vmatpush.bf16.msra.mxu0 %v877
    %926 = vmatpush.bf16.msra.mxu0 %v876
    %927 = vmatmul.bf16.gmra.mxu0 %v768
    %v928 = vpop.f32.mrf.mxu0
    %v929 = vadd.f32 %v910, %v928
    %v930 = vpop.f32.mrf.mxu0
    %v931 = vadd.f32 %v912, %v930
    %932 = vmatmul.bf16.gmra.mxu0 %v770
    %v933 = vpop.f32.mrf.mxu0
    %v934 = vadd.f32 %v915, %v933
    %v935 = vpop.f32.mrf.mxu0
    %v936 = vadd.f32 %v917, %v935
    %937 = vdwg.mxu0
    %v938 = vpack.c.bf16 %v929, %v929
    %v939 = vpack.c.bf16 %v931, %v931
    %v940 = vpack.c.bf16 %v934, %v934
    %v941 = vpack.c.bf16 %v936, %v936
    %vm942 = vcmask 519168
    %943 = vst.msk [vmem:[#allocation8] sm:$0xf] %vm942, %v938
    %944 = vst.msk [vmem:[#allocation8 + $0x4] sm:$0xf] %vm942, %v939
    %945 = vst.msk [vmem:[#allocation8 + $0x8] sm:$0xf] %vm942, %v940
    %946 = vst.msk [vmem:[#allocation8 + $0xc] sm:$0xf] %vm942, %v941
    // Predicated region
    $region26: #{tpu_custom_call.1} parent=1 // pred_check
      _
    $region27: #{tpu_custom_call.1} parent=1 // pred_check_branch
      %948 = sbr.rel (0) target = $region29
    $region28: #{tpu_custom_call.1} parent=1 // pred_region
      %950 = vsyncadd [#allocation4], 0
      %s951 = sshll.u32 [#allocation8], 4
      %s952 = int_to_ptr.vmem [resolvable:$true] %s951
      %s953 = sshll.u32 %s3, 4
      %s954 = int_to_ptr.hbm [resolvable:$true] %s953
      %959 = dma.vmem_to_hbm [thread:$0]  %s952, 256, %s954, [#allocation4], 64, 64, 4
    $region29: #{tpu_custom_call.1} parent=1 // pred_fallthru
      _
    // Predicated region
    $region30: #{tpu_custom_call.1} parent=1 // pred_check
      _
    $region31: #{tpu_custom_call.1} parent=1 // pred_check_branch
      %961 = sbr.rel (0) target = $region33
    $region32: #{tpu_custom_call.1} parent=1 // pred_region
      %963 = dma.done [#allocation4], 256
    $region33: #{tpu_custom_call.1} parent=1 // pred_fallthru
      _
    %964 = vsyncpa [#allocation3], 1
    %965 = vsyncpa [#allocation6], 1
    %966 = vsyncpa [#allocation4], 1

</llo_original>
